<compile_context>
chip_gen: v7x
topology: tpu7x:2x2x1
jax: 0.10.0
libtpu: 0.0.40
codegen_flags: <defaults>
</compile_context>

<pallas_src>
import jax
import jax.numpy as jnp
from jax.experimental import pallas as pl
from jax.experimental.pallas import tpu as pltpu

KERNEL_SIZE = 3  # Conv1d kernel_size=3, stride=1, padding=1


def _vtcnn_kernel(x_ref, w_ref, b_ref, o_ref):
    # x_ref: (Bb, T, C_in)  f32   unpadded activations (zero padding fused here)
    # w_ref: (3*C_in, C_out) bf16 conv weight, tap-major rows: [x[t-1]; x[t]; x[t+1]]
    # b_ref: (1, C_out)     f32   conv bias
    # o_ref: (Bb*T, C_out)        output rows, batch-major then time
    Bb, T, C_in = x_ref.shape

    x = x_ref[...].astype(jnp.bfloat16)                        # (Bb, T, C_in)
    zrow = jnp.zeros((Bb, 1, C_in), jnp.bfloat16)
    x_prev = jnp.concatenate([zrow, x[:, :T - 1, :]], axis=1)  # x[t-1], zero at t=0
    x_next = jnp.concatenate([x[:, 1:, :], zrow], axis=1)      # x[t+1], zero at t=T-1

    # im2col tile (Bb, T, 3*C_in); fold batch into the matmul M dimension.
    cols = jnp.concatenate([x_prev, x, x_next], axis=-1)
    cols = cols.reshape(Bb * T, KERNEL_SIZE * C_in)

    # Single MXU matmul, f32 accumulation; bias + ReLU in f32 on the VPU.
    y = jnp.dot(cols, w_ref[...], preferred_element_type=jnp.float32)
    y = y + b_ref[...]                                         # (1, C_out) broadcasts
    o_ref[...] = jnp.maximum(y, 0.0).astype(o_ref.dtype)       # ReLU


def visual_temporal_cnn(x, weight, bias, *, num_blocks=1):
    """x: (B, T, C_in); weight: (C_out, C_in, 3) (PyTorch Conv1d layout); bias: (C_out,).

    num_blocks splits the batch over a "parallel" grid axis:
      - 1 on v5e/v6e (single TensorCore; fewer grid steps = less overhead),
      - 2 on v7x so both TensorCores get work.
    """
    B, T, C_in = x.shape
    C_out = weight.shape[0]
    assert B % num_blocks == 0
    Bb = B // num_blocks

    # One-time host-side weight reorder: (C_out, C_in, 3) -> (3*C_in, C_out), bf16.
    w = jnp.transpose(weight, (2, 1, 0)).reshape(KERNEL_SIZE * C_in, C_out)
    w = w.astype(jnp.bfloat16)
    b = bias.reshape(1, C_out).astype(jnp.float32)

    out2d = pl.pallas_call(
        _vtcnn_kernel,
        out_shape=jax.ShapeDtypeStruct((B * T, C_out), x.dtype),
        grid_spec=pltpu.PrefetchScalarGridSpec(
            num_scalar_prefetch=0,
            grid=(num_blocks,),
            in_specs=[
                pl.BlockSpec((Bb, T, C_in), lambda i: (i, 0, 0)),
                pl.BlockSpec((KERNEL_SIZE * C_in, C_out), lambda i: (0, 0)),
                pl.BlockSpec((1, C_out), lambda i: (0, 0)),
            ],
            out_specs=pl.BlockSpec((Bb * T, C_out), lambda i: (i, 0)),
        ),
        compiler_params=pltpu.CompilerParams(
            dimension_semantics=("parallel",)),
    )(x, w, b)
    # TODO(synk): C_out=32 keeps the output lane dimension at 32/128 (masked
    # stores); making it lane-dense would require fusing with neighbouring ops,
    # i.e. a layout change outside this module's semantics.
    return out2d.reshape(B, T, C_out)


def _reference(x, weight, bias):
    # Pure-JAX f32 reference of the PyTorch forward.
    xt = jnp.transpose(x, (0, 2, 1))                           # (B, C_in, T)
    y = jax.lax.conv_general_dilated(
        xt, weight, window_strides=(1,), padding=((1, 1),),
        dimension_numbers=("NCH", "OIH", "NCH"))
    y = y + bias[None, :, None]
    y = jnp.transpose(y, (0, 2, 1))                            # (B, T, C_out)
    return jnp.maximum(y, 0.0)


if __name__ == "__main__":
    # cfg.visual_out_dim = 32 (C_in), cfg.visualcnn_dim = 32 (C_out)
    B, T, C_in, C_out = 2, 8, 32, 32

    key = jax.random.PRNGKey(0)
    kx, kw, kb = jax.random.split(key, 3)
    x = jax.random.normal(kx, (B, T, C_in), dtype=jnp.float32)
    weight = jax.random.normal(kw, (C_out, C_in, KERNEL_SIZE), dtype=jnp.float32) * 0.1
    bias = jax.random.normal(kb, (C_out,), dtype=jnp.float32) * 0.1

    ref = jax.block_until_ready(_reference(x, weight, bias))

    # Single grid step (v5e/v6e default).
    out1 = jax.block_until_ready(visual_temporal_cnn(x, weight, bias, num_blocks=1))
    # Two "parallel" grid steps (v7x: feeds both TensorCores).
    out2 = jax.block_until_ready(visual_temporal_cnn(x, weight, bias, num_blocks=2))

    assert out1.shape == (B, T, C_out)
    # bf16 MXU operands (f32 accumulation) => slightly loosened tolerance vs f32 reference.
    assert jnp.allclose(out1, ref, atol=3e-2, rtol=3e-2), "mismatch vs reference (num_blocks=1)"
    assert jnp.allclose(out2, ref, atol=3e-2, rtol=3e-2), "mismatch vs reference (num_blocks=2)"
    assert jnp.allclose(out1, out2, atol=1e-5, rtol=1e-5), "num_blocks paths disagree"

    print("KERNEL_OK")
</pallas_src>

<mosaic_0001>
module attributes {stable_mosaic.version = 11 : i64} {
  func.func @_vtcnn_kernel(%arg0: i32, %arg1: memref<2x8x32xf32, #tpu.memory_space<vmem>>, %arg2: memref<96x32xbf16, #tpu.memory_space<vmem>>, %arg3: memref<1x32xf32, #tpu.memory_space<vmem>>, %arg4: memref<16x32xf32, #tpu.memory_space<vmem>>) attributes {dimension_semantics = [#tpu.dimension_semantics<parallel>], iteration_bounds = array<i64: 1>, scalar_prefetch = 0 : i64, scratch_operands = 0 : i64, tpu.core_type = #tpu.core_type<tc>, window_params = [{transform_indices = @transform_0, window_bounds = array<i64: 2, 8, 32>}, {pipeline_mode = #tpu.pipeline_mode<synchronous>, transform_indices = @transform_1, window_bounds = array<i64: 96, 32>}, {pipeline_mode = #tpu.pipeline_mode<synchronous>, transform_indices = @transform_2, window_bounds = array<i64: 1, 32>}, {transform_indices = @transform_3, window_bounds = array<i64: 16, 32>}]} {
    %c0 = arith.constant 0 : index
    %c0_0 = arith.constant 0 : index
    %c0_1 = arith.constant 0 : index
    %0 = vector.load %arg1[%c0, %c0_0, %c0_1] : memref<2x8x32xf32, #tpu.memory_space<vmem>>, vector<2x8x32xf32>
    %1 = arith.truncf %0 : vector<2x8x32xf32> to vector<2x8x32xbf16>
    %cst = arith.constant 0.000000e+00 : bf16
    %2 = vector.broadcast %cst : bf16 to vector<2x1x32xbf16>
    %3 = vector.extract_strided_slice %1 {offsets = [0, 0, 0], sizes = [2, 7, 32], strides = [1, 1, 1]} : vector<2x8x32xbf16> to vector<2x7x32xbf16>
    %4 = tpu.concatenate %2, %3 in 1 : vector<2x1x32xbf16>, vector<2x7x32xbf16> -> vector<2x8x32xbf16>
    %5 = vector.extract_strided_slice %1 {offsets = [0, 1, 0], sizes = [2, 7, 32], strides = [1, 1, 1]} : vector<2x8x32xbf16> to vector<2x7x32xbf16>
    %6 = tpu.concatenate %5, %2 in 1 : vector<2x7x32xbf16>, vector<2x1x32xbf16> -> vector<2x8x32xbf16>
    %7 = tpu.concatenate %4, %1, %6 in 2 : vector<2x8x32xbf16>, vector<2x8x32xbf16>, vector<2x8x32xbf16> -> vector<2x8x96xbf16>
    %8 = vector.shape_cast %7 : vector<2x8x96xbf16> to vector<16x96xbf16>
    %c0_2 = arith.constant 0 : index
    %c0_3 = arith.constant 0 : index
    %9 = vector.load %arg2[%c0_2, %c0_3] : memref<96x32xbf16, #tpu.memory_space<vmem>>, vector<96x32xbf16>
    %cst_4 = arith.constant dense<0.000000e+00> : vector<16x32xf32>
    %10 = tpu.matmul %8, %9, %cst_4 {dimension_numbers = #tpu.dot_dimension_numbers<[1], [0], [0], [1], [0, 0, 1, 1], [], []>} : vector<16x96xbf16>, vector<96x32xbf16>, vector<16x32xf32> -> vector<16x32xf32>
    %c0_5 = arith.constant 0 : index
    %c0_6 = arith.constant 0 : index
    %11 = vector.load %arg3[%c0_5, %c0_6] : memref<1x32xf32, #tpu.memory_space<vmem>>, vector<1x32xf32>
    %12 = vector.broadcast %11 : vector<1x32xf32> to vector<16x32xf32>
    %13 = arith.addf %10, %12 : vector<16x32xf32>
    %cst_7 = arith.constant 0.000000e+00 : f32
    %14 = vector.broadcast %cst_7 : f32 to vector<16x32xf32>
    %15 = arith.maximumf %13, %14 : vector<16x32xf32>
    %c0_8 = arith.constant 0 : index
    %c0_9 = arith.constant 0 : index
    %16 = vector.load %arg4[%c0_8, %c0_9] : memref<16x32xf32, #tpu.memory_space<vmem>>, vector<16x32xf32>
    tpu.vector_store %arg4[%c0_8, %c0_9], %15 {strides = array<i32>} : memref<16x32xf32, #tpu.memory_space<vmem>>, vector<16x32xf32>,
    return
  }
  func.func @transform_0(%arg0: i32) -> (i32, i32, i32) {
    %c0_i32 = arith.constant 0 : i32
    %c0_i32_0 = arith.constant 0 : i32
    %c0_i32_1 = arith.constant 0 : i32
    return %arg0, %c0_i32, %c0_i32_0 : i32, i32, i32
  }
  func.func @transform_1(%arg0: i32) -> (i32, i32) {
    %c0_i32 = arith.constant 0 : i32
    %c0_i32_0 = arith.constant 0 : i32
    %c0_i32_1 = arith.constant 0 : i32
    return %c0_i32, %c0_i32_0 : i32, i32
  }
  func.func @transform_2(%arg0: i32) -> (i32, i32) {
    %c0_i32 = arith.constant 0 : i32
    %c0_i32_0 = arith.constant 0 : i32
    %c0_i32_1 = arith.constant 0 : i32
    return %c0_i32, %c0_i32_0 : i32, i32
  }
  func.func @transform_3(%arg0: i32) -> (i32, i32) {
    %c0_i32 = arith.constant 0 : i32
    %c0_i32_0 = arith.constant 0 : i32
    return %arg0, %c0_i32 : i32, i32
  }
}

</mosaic_0001>

<llo_original>
// kernel: tpu_custom_call.1
$region0: #{tpu_custom_call.1}
  #allocation0 [shape = 'u32[]', space=smem, size = 0x4, offset = 0x4, fixed_abs, tag = 'smem constant byte address 0x4 - core index']
  #allocation1 [shape = 'u32[144,128]{1,0:T(1,128)}', space=vmem, size = 0x12000, scoped, tag = 'internal scratch']
  %s0 = inlined_call_operand.vmem [shape: f32[2,8,32], index: 0, kind: input, shape index: {}]
  %s1 = inlined_call_operand.vmem [shape: bf16[96,32], index: 1, kind: input, shape index: {}]
  %s2 = inlined_call_operand.vmem [shape: f32[1,32], index: 2, kind: input, shape index: {}]
  %s3 = inlined_call_operand.hbm [shape: f32[16,32], index: 3, kind: output, shape index: {}]
  %s4 = sld [smem:[#allocation0]]
  $region22: #{tpu_custom_call.1} parent=0
    _
  %s6 = ssub.s32 1, %s4
  %s7 = scalar_select 0, %s6, %s4
  $region1: #{tpu_custom_call.1} parent=0
    #allocation2 [shape = 'u8[8192]{0}', space=vmem, size = 0x2000, scoped, tag = 'output window, operand 0, single buffered']
    #allocation3 [shape = 's32[1]{0}', space=sflag, size = 0x4, scoped, tag = 'scoped memory for tpu_custom_call.1']
    %8 = vsyncpa [#allocation3], 0
    // Predicated region
    $region2: #{tpu_custom_call.1} parent=1 // pred_check
      _
    $region3: #{tpu_custom_call.1} parent=1 // pred_check_branch
      %10 = sbr.rel (0) target = $region5
    $region4: #{tpu_custom_call.1} parent=1 // pred_region
      _
    $region5: #{tpu_custom_call.1} parent=1 // pred_fallthru
      _
    // Predicated region
    $region6: #{tpu_custom_call.1} parent=1 // pred_check
      _
    $region7: #{tpu_custom_call.1} parent=1 // pred_check_branch
      %12 = sbr.rel (0) target = $region9
    $region8: #{tpu_custom_call.1} parent=1 // pred_region
      _
    $region9: #{tpu_custom_call.1} parent=1 // pred_fallthru
      _
    // Predicated region
    $region10: #{tpu_custom_call.1} parent=1 // pred_check
      _
    $region11: #{tpu_custom_call.1} parent=1 // pred_check_branch
      %14 = sbr.rel (0) target = $region13
    $region12: #{tpu_custom_call.1} parent=1 // pred_region
      _
    $region13: #{tpu_custom_call.1} parent=1 // pred_fallthru
      _
    %v16 = vld [vmem:[%s0] sm:$0xff]
    %v17 = vld [vmem:[%s0 + $0x8] sm:$0xff]
    %v18 = vpack.c.bf16 %v16, %v16
    %v19 = vpack.c.bf16 %v17, %v17
    %v21 = vshrl.u32 %v18, 16
    %v23 = vrot.slane %v21, 7
    %v24 = vshll.u32 %v18, 16
    %v26 = vor.u32 %v23, %v24
    %v28 = vshrl.u32 %v19, 16
    %v30 = vrot.slane %v28, 7
    %v31 = vshll.u32 %v19, 16
    %v33 = vor.u32 %v30, %v31
    %vm36 = vcmask 1040384
    %vm37 = vsmask.f32 256
    %vm38 = vmand %vm36, %vm37
    %v39 = vsel %vm38, 0, %v26
    %v40 = vsel %vm38, 0, %v33
    %v41 = vrot.slane %v24, 1
    %v42 = vor.u32 %v21, %v41
    %v43 = vrot.slane %v31, 1
    %v44 = vor.u32 %v28, %v43
    %vm47 = vcmask 1043456
    %vm48 = vsmask.f32 3328
    %vm49 = vmand %vm47, %vm48
    %v50 = vsel %vm49, %v42, 0
    %v51 = vsel %vm49, %v44, 0
    %54 = vrot.lane.b32.xlu0 %v18, 32
    %v55 = vpop.permute.xlu0 %54
    %56 = vrot.lane.b32.xlu0 %v19, 32
    %v57 = vpop.permute.xlu0 %56
    %60 = vrot.lane.b32.xlu0 %v50, 64
    %v61 = vpop.permute.xlu0 %60
    %62 = vrot.lane.b32.xlu0 %v51, 64
    %v63 = vpop.permute.xlu0 %62
    %vm64 = vcmask 261120
    %v67 = vsel %vm64, %v39, %v55
    %v70 = vsel %vm64, %v40, %v57
    %vm71 = vcmask 523264
    %v73 = vsel %vm71, %v67, %v61
    %v75 = vsel %vm71, %v70, %v63
    %v76 = vld [vmem:[%s1] sm:$0xf]
    %v77 = vld [vmem:[%s1 + $0x4] sm:$0xf]
    %v78 = vld [vmem:[%s1 + $0x8] sm:$0xf]
    %v79 = vld [vmem:[%s1 + $0xc] sm:$0xf]
    %v80 = vld [vmem:[%s1 + $0x10] sm:$0xf]
    %v81 = vld [vmem:[%s1 + $0x14] sm:$0xf]
    %v82 = vld [vmem:[%s1 + $0x18] sm:$0xf]
    %v83 = vld [vmem:[%s1 + $0x1c] sm:$0xf]
    %v84 = vld [vmem:[%s1 + $0x20] sm:$0xf]
    %v85 = vld [vmem:[%s1 + $0x24] sm:$0xf]
    %v86 = vld [vmem:[%s1 + $0x28] sm:$0xf]
    %v87 = vld [vmem:[%s1 + $0x2c] sm:$0xf]
    %v88 = vld [vmem:[%s2] sm:$0x1]
    %v90 = vlaneseq
    %v91 = vshrl.u32 %v90, 7
    %v92 = vsub.s32 0, %v91
    %v93 = vrot.slane %v88, %v92
    %v97 = vunpack.c.l.b16 %v73
    %v98 = vunpack.c.l.b16 %v75
    %v99 = vpack.c.b16 %v98, %v97
    %v112 = vunpack.c.l.b16 %v76
    %v113 = vunpack.c.l.b16 %v77
    %v114 = vunpack.c.l.b16 %v78
    %v115 = vunpack.c.l.b16 %v79
    %v116 = vunpack.c.l.b16 %v80
    %v117 = vunpack.c.l.b16 %v81
    %v118 = vunpack.c.l.b16 %v82
    %v119 = vunpack.c.l.b16 %v83
    %v120 = vunpack.c.l.b16 %v84
    %v121 = vunpack.c.l.b16 %v85
    %v122 = vunpack.c.l.b16 %v86
    %v123 = vunpack.c.l.b16 %v87
    %v124 = vpack.c.b16 %v113, %v112
    %v125 = vpack.c.b16 %v115, %v114
    %v126 = vpack.c.b16 %v117, %v116
    %v127 = vpack.c.b16 %v119, %v118
    %v128 = vpack.c.b16 %v121, %v120
    %v129 = vpack.c.b16 %v123, %v122
    %vm136 = vcmask 785408
    %v138 = vsel %vm136, %v99, 0
    %140 = vmatprep.subr.bf16.mxu0 0
    %141 = vmatpush1.bf16.msra.mxu0 %v124
    %142 = vmatprep.subr.bf16.mxu0 0
    %143 = vmatpush1.bf16.msra.mxu0 %v125
    %144 = vmatprep.subr.bf16.mxu0 0
    %145 = vmatpush1.bf16.msra.mxu0 %v126
    %146 = vmatprep.subr.bf16.mxu0 0
    %147 = vmatpush1.bf16.msra.mxu0 %v127
    %148 = vmatprep.subr.bf16.mxu0 0
    %149 = vmatpush1.bf16.msra.mxu0 %v128
    %150 = vmatprep.subr.bf16.mxu0 0
    %151 = vmatpush1.bf16.msra.mxu0 %v129
    %152 = vmatprep.subr.bf16.mxu0 0
    %153 = vmatpush1.bf16.msra.mxu0 0
    %154 = vmatprep.subr.bf16.mxu0 0
    %155 = vmatpush1.bf16.msra.mxu0 0
    %156 = vmatprep.subr.bf16.mxu0 0
    %157 = vmatpush1.bf16.msra.mxu0 0
    %158 = vmatprep.subr.bf16.mxu0 0
    %159 = vmatpush1.bf16.msra.mxu0 0
    %160 = vmatprep.subr.bf16.mxu0 0
    %161 = vmatpush1.bf16.msra.mxu0 0
    %162 = vmatprep.subr.bf16.mxu0 0
    %163 = vmatpush1.bf16.msra.mxu0 0
    %164 = vmatprep.subr.bf16.mxu0 0
    %165 = vmatpush1.bf16.msra.mxu0 0
    %166 = vmatprep.subr.bf16.mxu0 0
    %167 = vmatpush1.bf16.msra.mxu0 0
    %168 = vmatprep.subr.bf16.mxu0 0
    %169 = vmatpush1.bf16.msra.mxu0 0
    %170 = vmatprep.subr.bf16.mxu0 0
    %171 = vmatpush1.bf16.msra.mxu0 0
    %172 = vmatprep.mubr.bf16.mxu0 0
    %173 = vmatmul.mubr.bf16.gmra.mrb[0].mxu0 %v138
    %v174 = vpop.f32.mrb[0].mxu0
    %v175 = vadd.f32 %v93, %v174
    %v176 = vpop.f32.mrb[0].mxu0
    %v177 = vpop.f32.mrb[0].mxu0
    %v178 = vadd.f32 %v93, %v177
    %v179 = vpop.f32.mrb[0].mxu0
    %180 = vdwg.mxu0
    %v181 = vmax.f32 %v175, 0.0
    %v182 = vmax.f32 %v178, 0.0
    %183 = vst.msk [vmem:[#allocation2] sm:$0xff] %vm64, %v181
    %184 = vst.msk [vmem:[#allocation2 + $0x8] sm:$0xff] %vm64, %v182
    // Predicated region
    $region14: #{tpu_custom_call.1} parent=1 // pred_check
      _
    $region15: #{tpu_custom_call.1} parent=1 // pred_check_branch
      %186 = sbr.rel (0) target = $region17
    $region16: #{tpu_custom_call.1} parent=1 // pred_region
      %s188 = ssub.s32 256, 256
      %189 = vsyncadd [#allocation3], %s188
      %s190 = sshll.u32 [#allocation2], 4
      %s191 = int_to_ptr.vmem [resolvable:$true] %s190
      %196 = dma.vmem_to_hbm [thread:$0]  %s191, 256, %s3, [#allocation3], 128, 128, 8
    $region17: #{tpu_custom_call.1} parent=1 // pred_fallthru
      _
    // Predicated region
    $region18: #{tpu_custom_call.1} parent=1 // pred_check
      _
    $region19: #{tpu_custom_call.1} parent=1 // pred_check_branch
      %198 = sbr.rel (0) target = $region21
    $region20: #{tpu_custom_call.1} parent=1 // pred_region
      %199 = dma.done [#allocation3], 256
    $region21: #{tpu_custom_call.1} parent=1 // pred_fallthru
      _
    %200 = vsyncpa [#allocation3], 1

</llo_original>
